<compile_context>
chip_gen: v7x
topology: tpu7x:2x2x1
jax: 0.10.0
libtpu: 0.0.40
codegen_flags: <defaults>
</compile_context>

<pallas_src>
import functools

import jax
import jax.numpy as jnp
from jax.experimental import pallas as pl
from jax.experimental.pallas import tpu as pltpu


def _sign(x):
    # torch.sign semantics: sign(0) == 0
    return jnp.where(x > 0, 1.0, jnp.where(x < 0, -1.0, 0.0)).astype(x.dtype)


# ---------------------------------------------------------------------------
# Fused kernel: one grid step == Nb images.
#   x_ref     : [Nb, H, W*Cin]            original activation (f32, lane-dense)
#   w_ref     : [K*W*Cin, Wout*Cout]      banded sign(W) slab (kw + width-pad folded), bf16
#   scale_ref : [1, W*Cin]                BN batch-stat scale (per-ch, tiled W times)
#   shift_ref : [1, W*Cin]                BN batch-stat shift (per-ch, tiled W times)
#   bias_ref  : [1, Wout*Cout]            conv bias (per-ch, tiled Wout times)
#   out_ref   : [Nb, Hout, Wout*Cout]     output block (lane-dense)
#   pad_ref   : VMEM scratch [Nb, H+2p, W*Cin] bf16, height-padded binarized act
# ---------------------------------------------------------------------------
def _fused_xnor_kernel(x_ref, w_ref, scale_ref, shift_ref, bias_ref, out_ref,
                       pad_ref, *, K, dil, pad, H, W, Cin, Hout, Wout, Cout, Nb):
    x = x_ref[...]                                             # [Nb, H, W*Cin] f32

    # BatchNorm (folded batch stats) + binary activation; single bf16 cast.
    xb = _sign(x * scale_ref[...] + shift_ref[...]).astype(jnp.bfloat16)

    # Height zero-padding via 128-lane-aligned bf16 scratch.  Width padding is
    # already folded into the banded weight, so the lane dim stays W*Cin.
    if pad > 0:
        zpad = jnp.zeros((Nb, pad, W * Cin), jnp.bfloat16)
        pad_ref[:, :pad, :] = zpad                             # top pad rows
        pad_ref[:, pad + H:, :] = zpad                         # bottom pad rows
    pad_ref[:, pad:pad + H, :] = xb                            # interior

    # Single MXU contraction: stack the K row-shifted (sublane-only, 128-lane
    # aligned) views along the reduction axis.
    lhs = jnp.concatenate(
        [pad_ref[:, kh * dil:kh * dil + Hout, :] for kh in range(K)],
        axis=-1).reshape(Nb * Hout, K * W * Cin)               # [Nb*Hout, K*W*Cin]
    acc = jnp.dot(lhs, w_ref[...], preferred_element_type=jnp.float32)
    acc = acc.reshape(Nb, Hout, Wout * Cout)

    # bias + ReLU + identity shortcut (Cin == Cout -> same lane layout as x).
    y = jnp.maximum(acc + bias_ref[...], 0.0) + x
    out_ref[...] = y.astype(out_ref.dtype)


def xnor_dil_conv_forward(x_nchw, w_oihw, bias, gamma, beta, *,
                          stride=1, padding=2, dilation=2, eps=1e-5,
                          images_per_block=None):
    N, Cin, H, W = x_nchw.shape
    Cout, _, K, _ = w_oihw.shape
    if stride != 1:
        # TODO(synk): stride>1 path (AvgPool2d(2) shortcut) not implemented.
        raise NotImplementedError("only stride=1 (Identity shortcut) supported")

    Hout = (H + 2 * padding - dilation * (K - 1) - 1) // stride + 1
    Wout = (W + 2 * padding - dilation * (K - 1) - 1) // stride + 1
    assert Hout == H and Wout == W and Cout == Cin, "identity shortcut needs same shape"

    Nb = images_per_block or min(N, 8)
    assert N % Nb == 0, "batch must divide evenly into image blocks"

    xf = x_nchw.astype(jnp.float32)

    # ---- lane-dense NHWC view + BN batch statistics (tiny reduction, XLA) ---
    x_nhwc = jnp.transpose(xf, (0, 2, 3, 1))                   # [N, H, W, Cin]
    mean = jnp.mean(x_nhwc, axis=(0, 1, 2))
    var = jnp.mean(jnp.square(x_nhwc - mean), axis=(0, 1, 2))  # biased (BN training mode)
    scale = gamma.astype(jnp.float32) * jax.lax.rsqrt(var + eps)
    shift = beta.astype(jnp.float32) - mean * scale
    # Tile per-channel vectors to the lane layout [.., w*Cin + c].
    scale_t = jnp.tile(scale, W).reshape(1, W * Cin)
    shift_t = jnp.tile(shift, W).reshape(1, W * Cin)
    bias_t = jnp.tile(bias.astype(jnp.float32), Wout).reshape(1, Wout * Cout)

    x2d = x_nhwc.reshape(N, H, W * Cin)                        # [N, H, W*Cin]

    # ---- hoisted weight binarization + banded (kw + width-pad folded) slab --
    wb = _sign(w_oihw.astype(jnp.float32))                     # [Cout, Cin, K, K]
    wb_k = jnp.transpose(wb, (2, 3, 1, 0))                     # [kh, kw, ci, co]
    kw_idx = jnp.arange(K)[:, None, None]
    w_idx = jnp.arange(W)[None, :, None]
    wo_idx = jnp.arange(Wout)[None, None, :]
    # band[kw, w, wo] = 1 iff input column w feeds output column wo through tap kw
    band = (w_idx == wo_idx + kw_idx * dilation - padding).astype(jnp.float32)
    # Wslab[kh, w, ci, wo, co] = sum_kw band[kw, w, wo] * sign(W)[co, ci, kh, kw]
    wslab = jnp.einsum('kwv,hkio->hwivo', band, wb_k)
    wslab = wslab.reshape(K * W * Cin, Wout * Cout).astype(jnp.bfloat16)

    Hp = H + 2 * padding

    out2d = pl.pallas_call(
        functools.partial(_fused_xnor_kernel, K=K, dil=dilation, pad=padding,
                          H=H, W=W, Cin=Cin, Hout=Hout, Wout=Wout, Cout=Cout,
                          Nb=Nb),
        out_shape=jax.ShapeDtypeStruct((N, Hout, Wout * Cout), jnp.float32),
        grid=(N // Nb,),
        in_specs=[
            pl.BlockSpec((Nb, H, W * Cin), lambda n: (n, 0, 0)),
            pl.BlockSpec((K * W * Cin, Wout * Cout), lambda n: (0, 0)),
            pl.BlockSpec((1, W * Cin), lambda n: (0, 0)),
            pl.BlockSpec((1, W * Cin), lambda n: (0, 0)),
            pl.BlockSpec((1, Wout * Cout), lambda n: (0, 0)),
        ],
        out_specs=pl.BlockSpec((Nb, Hout, Wout * Cout), lambda n: (n, 0, 0)),
        scratch_shapes=[pltpu.VMEM((Nb, Hp, W * Cin), jnp.bfloat16)],
        compiler_params=pltpu.CompilerParams(
            dimension_semantics=("parallel",)),
    )(x2d, wslab, scale_t, shift_t, bias_t)

    out_nhwc = out2d.reshape(N, Hout, Wout, Cout)
    return jnp.transpose(out_nhwc, (0, 3, 1, 2))               # back to NCHW


def _reference(x, w, bias, gamma, beta, stride, padding, dilation, eps=1e-5):
    # Pure-JAX reference of the exact forward semantics (NCHW throughout).
    mean = jnp.mean(x, axis=(0, 2, 3))
    var = jnp.mean((x - mean.reshape(1, -1, 1, 1)) ** 2, axis=(0, 2, 3))
    scale = gamma * jax.lax.rsqrt(var + eps)
    shift = beta - mean * scale
    xn = x * scale.reshape(1, -1, 1, 1) + shift.reshape(1, -1, 1, 1)
    xb = _sign(xn)
    wb = _sign(w)
    y = jax.lax.conv_general_dilated(
        xb, wb,
        window_strides=(stride, stride),
        padding=((padding, padding), (padding, padding)),
        rhs_dilation=(dilation, dilation),
        dimension_numbers=("NCHW", "OIHW", "NCHW"))
    y = jnp.maximum(y + bias.reshape(1, -1, 1, 1), 0.0)
    return y + x   # identity shortcut (stride == 1)


if __name__ == "__main__":
    key = jax.random.PRNGKey(0)
    k1, k2 = jax.random.split(key)

    # XNORDilConv(C_in=8, C_out=8, kernel_size=3, stride=1, padding=2, dilation=2)
    N, C_in, H, W = 2, 8, 16, 16
    kernel_size, stride, padding, dilation = 3, 1, 2, 2

    x = jax.random.normal(k1, (N, C_in, H, W), dtype=jnp.float32)
    # full_precision ~ Normal(0, 0.05), shape [C_out, C_in//groups, k, k]
    full_precision = 0.05 * jax.random.normal(
        k2, (C_in, C_in, kernel_size, kernel_size), dtype=jnp.float32)
    bias = jnp.zeros((C_in,), jnp.float32)     # XNORConv2d.bias init: zeros
    gamma = jnp.ones((C_in,), jnp.float32)     # BatchNorm2d affine weight init
    beta = jnp.zeros((C_in,), jnp.float32)     # BatchNorm2d affine bias init

    out = xnor_dil_conv_forward(x, full_precision, bias, gamma, beta,
                                stride=stride, padding=padding, dilation=dilation)
    out = jax.block_until_ready(out)

    ref = _reference(x, full_precision, bias, gamma, beta,
                     stride, padding, dilation)
    assert out.shape == ref.shape == (N, C_in, H, W)
    assert jnp.allclose(out, ref, atol=1e-4, rtol=1e-4), \
        f"max abs err {jnp.max(jnp.abs(out - ref))}"
    print("KERNEL_OK")
</pallas_src>

<mosaic_0001>
module attributes {stable_mosaic.version = 11 : i64} {
  func.func @_fused_xnor_kernel(%arg0: i32, %arg1: memref<2x16x128xf32, #tpu.memory_space<vmem>>, %arg2: memref<384x128xbf16, #tpu.memory_space<vmem>>, %arg3: memref<1x128xf32, #tpu.memory_space<vmem>>, %arg4: memref<1x128xf32, #tpu.memory_space<vmem>>, %arg5: memref<1x128xf32, #tpu.memory_space<vmem>>, %arg6: memref<2x16x128xf32, #tpu.memory_space<vmem>>, %arg7: memref<2x20x128xbf16, #tpu.memory_space<vmem>>) attributes {dimension_semantics = [#tpu.dimension_semantics<parallel>], iteration_bounds = array<i64: 1>, scalar_prefetch = 0 : i64, scratch_operands = 1 : i64, tpu.core_type = #tpu.core_type<tc>, window_params = [{transform_indices = @transform_0, window_bounds = array<i64: 2, 16, 128>}, {pipeline_mode = #tpu.pipeline_mode<synchronous>, transform_indices = @transform_1, window_bounds = array<i64: 384, 128>}, {pipeline_mode = #tpu.pipeline_mode<synchronous>, transform_indices = @transform_2, window_bounds = array<i64: 1, 128>}, {pipeline_mode = #tpu.pipeline_mode<synchronous>, transform_indices = @transform_3, window_bounds = array<i64: 1, 128>}, {pipeline_mode = #tpu.pipeline_mode<synchronous>, transform_indices = @transform_4, window_bounds = array<i64: 1, 128>}, {transform_indices = @transform_5, window_bounds = array<i64: 2, 16, 128>}]} {
    %c0 = arith.constant 0 : index
    %c0_0 = arith.constant 0 : index
    %c0_1 = arith.constant 0 : index
    %0 = vector.load %arg1[%c0, %c0_0, %c0_1] : memref<2x16x128xf32, #tpu.memory_space<vmem>>, vector<2x16x128xf32>
    %c0_2 = arith.constant 0 : index
    %c0_3 = arith.constant 0 : index
    %1 = vector.load %arg3[%c0_2, %c0_3] : memref<1x128xf32, #tpu.memory_space<vmem>>, vector<1x128xf32>
    %2 = vector.shape_cast %1 : vector<1x128xf32> to vector<1x1x128xf32>
    %3 = vector.broadcast %2 : vector<1x1x128xf32> to vector<2x16x128xf32>
    %4 = arith.mulf %0, %3 : vector<2x16x128xf32>
    %c0_4 = arith.constant 0 : index
    %c0_5 = arith.constant 0 : index
    %5 = vector.load %arg4[%c0_4, %c0_5] : memref<1x128xf32, #tpu.memory_space<vmem>>, vector<1x128xf32>
    %6 = vector.shape_cast %5 : vector<1x128xf32> to vector<1x1x128xf32>
    %7 = vector.broadcast %6 : vector<1x1x128xf32> to vector<2x16x128xf32>
    %8 = arith.addf %4, %7 : vector<2x16x128xf32>
    %cst = arith.constant 0.000000e+00 : f32
    %9 = vector.broadcast %cst : f32 to vector<2x16x128xf32>
    %10 = arith.cmpf ogt, %8, %9 : vector<2x16x128xf32>
    %cst_6 = arith.constant 0.000000e+00 : f32
    %11 = vector.broadcast %cst_6 : f32 to vector<2x16x128xf32>
    %12 = arith.cmpf olt, %8, %11 : vector<2x16x128xf32>
    %cst_7 = arith.constant -1.000000e+00 : f32
    %cst_8 = arith.constant 0.000000e+00 : f32
    %13 = vector.broadcast %cst_7 : f32 to vector<2x16x128xf32>
    %14 = vector.broadcast %cst_8 : f32 to vector<2x16x128xf32>
    %15 = arith.select %12, %13, %14 : vector<2x16x128xi1>, vector<2x16x128xf32>
    %cst_9 = arith.constant 1.000000e+00 : f32
    %16 = vector.broadcast %cst_9 : f32 to vector<2x16x128xf32>
    %17 = arith.select %10, %16, %15 : vector<2x16x128xi1>, vector<2x16x128xf32>
    %18 = arith.truncf %17 : vector<2x16x128xf32> to vector<2x16x128xbf16>
    %cst_10 = arith.constant 0.000000e+00 : bf16
    %19 = vector.broadcast %cst_10 : bf16 to vector<2x2x128xbf16>
    %c0_11 = arith.constant 0 : index
    %c0_12 = arith.constant 0 : index
    %c0_13 = arith.constant 0 : index
    %20 = vector.load %arg7[%c0_11, %c0_12, %c0_13] : memref<2x20x128xbf16, #tpu.memory_space<vmem>>, vector<2x2x128xbf16>
    tpu.vector_store %arg7[%c0_11, %c0_12, %c0_13], %19 {strides = array<i32>} : memref<2x20x128xbf16, #tpu.memory_space<vmem>>, vector<2x2x128xbf16>,
    %c0_14 = arith.constant 0 : index
    %c18 = arith.constant 18 : index
    %c0_15 = arith.constant 0 : index
    %21 = vector.load %arg7[%c0_14, %c18, %c0_15] : memref<2x20x128xbf16, #tpu.memory_space<vmem>>, vector<2x2x128xbf16>
    tpu.vector_store %arg7[%c0_14, %c18, %c0_15], %19 {strides = array<i32>} : memref<2x20x128xbf16, #tpu.memory_space<vmem>>, vector<2x2x128xbf16>,
    %c0_16 = arith.constant 0 : index
    %c2 = arith.constant 2 : index
    %c0_17 = arith.constant 0 : index
    %22 = vector.load %arg7[%c0_16, %c2, %c0_17] : memref<2x20x128xbf16, #tpu.memory_space<vmem>>, vector<2x16x128xbf16>
    tpu.vector_store %arg7[%c0_16, %c2, %c0_17], %18 {strides = array<i32>} : memref<2x20x128xbf16, #tpu.memory_space<vmem>>, vector<2x16x128xbf16>,
    %c0_18 = arith.constant 0 : index
    %c0_19 = arith.constant 0 : index
    %c0_20 = arith.constant 0 : index
    %23 = vector.load %arg7[%c0_18, %c0_19, %c0_20] : memref<2x20x128xbf16, #tpu.memory_space<vmem>>, vector<2x16x128xbf16>
    %c0_21 = arith.constant 0 : index
    %c2_22 = arith.constant 2 : index
    %c0_23 = arith.constant 0 : index
    %24 = vector.load %arg7[%c0_21, %c2_22, %c0_23] : memref<2x20x128xbf16, #tpu.memory_space<vmem>>, vector<2x16x128xbf16>
    %c0_24 = arith.constant 0 : index
    %c4 = arith.constant 4 : index
    %c0_25 = arith.constant 0 : index
    %25 = vector.load %arg7[%c0_24, %c4, %c0_25] : memref<2x20x128xbf16, #tpu.memory_space<vmem>>, vector<2x16x128xbf16>
    %26 = tpu.concatenate %23, %24, %25 in 2 : vector<2x16x128xbf16>, vector<2x16x128xbf16>, vector<2x16x128xbf16> -> vector<2x16x384xbf16>
    %27 = vector.shape_cast %26 : vector<2x16x384xbf16> to vector<32x384xbf16>
    %c0_26 = arith.constant 0 : index
    %c0_27 = arith.constant 0 : index
    %28 = vector.load %arg2[%c0_26, %c0_27] : memref<384x128xbf16, #tpu.memory_space<vmem>>, vector<384x128xbf16>
    %cst_28 = arith.constant dense<0.000000e+00> : vector<32x128xf32>
    %29 = tpu.matmul %27, %28, %cst_28 {dimension_numbers = #tpu.dot_dimension_numbers<[1], [0], [0], [1], [0, 0, 1, 1], [], []>} : vector<32x384xbf16>, vector<384x128xbf16>, vector<32x128xf32> -> vector<32x128xf32>
    %30 = vector.shape_cast %29 : vector<32x128xf32> to vector<2x16x128xf32>
    %c0_29 = arith.constant 0 : index
    %c0_30 = arith.constant 0 : index
    %31 = vector.load %arg5[%c0_29, %c0_30] : memref<1x128xf32, #tpu.memory_space<vmem>>, vector<1x128xf32>
    %32 = vector.shape_cast %31 : vector<1x128xf32> to vector<1x1x128xf32>
    %33 = vector.broadcast %32 : vector<1x1x128xf32> to vector<2x16x128xf32>
    %34 = arith.addf %30, %33 : vector<2x16x128xf32>
    %cst_31 = arith.constant 0.000000e+00 : f32
    %35 = vector.broadcast %cst_31 : f32 to vector<2x16x128xf32>
    %36 = arith.maximumf %34, %35 : vector<2x16x128xf32>
    %37 = arith.addf %36, %0 : vector<2x16x128xf32>
    %c0_32 = arith.constant 0 : index
    %c0_33 = arith.constant 0 : index
    %c0_34 = arith.constant 0 : index
    %38 = vector.load %arg6[%c0_32, %c0_33, %c0_34] : memref<2x16x128xf32, #tpu.memory_space<vmem>>, vector<2x16x128xf32>
    tpu.vector_store %arg6[%c0_32, %c0_33, %c0_34], %37 {strides = array<i32>} : memref<2x16x128xf32, #tpu.memory_space<vmem>>, vector<2x16x128xf32>,
    return
  }
  func.func @transform_0(%arg0: i32) -> (i32, i32, i32) {
    %c0_i32 = arith.constant 0 : i32
    %c0_i32_0 = arith.constant 0 : i32
    %c0_i32_1 = arith.constant 0 : i32
    return %arg0, %c0_i32, %c0_i32_0 : i32, i32, i32
  }
  func.func @transform_1(%arg0: i32) -> (i32, i32) {
    %c0_i32 = arith.constant 0 : i32
    %c0_i32_0 = arith.constant 0 : i32
    %c0_i32_1 = arith.constant 0 : i32
    return %c0_i32, %c0_i32_0 : i32, i32
  }
  func.func @transform_2(%arg0: i32) -> (i32, i32) {
    %c0_i32 = arith.constant 0 : i32
    %c0_i32_0 = arith.constant 0 : i32
    %c0_i32_1 = arith.constant 0 : i32
    return %c0_i32, %c0_i32_0 : i32, i32
  }
  func.func @transform_3(%arg0: i32) -> (i32, i32) {
    %c0_i32 = arith.constant 0 : i32
    %c0_i32_0 = arith.constant 0 : i32
    %c0_i32_1 = arith.constant 0 : i32
    return %c0_i32, %c0_i32_0 : i32, i32
  }
  func.func @transform_4(%arg0: i32) -> (i32, i32) {
    %c0_i32 = arith.constant 0 : i32
    %c0_i32_0 = arith.constant 0 : i32
    %c0_i32_1 = arith.constant 0 : i32
    return %c0_i32, %c0_i32_0 : i32, i32
  }
  func.func @transform_5(%arg0: i32) -> (i32, i32, i32) {
    %c0_i32 = arith.constant 0 : i32
    %c0_i32_0 = arith.constant 0 : i32
    %c0_i32_1 = arith.constant 0 : i32
    return %arg0, %c0_i32, %c0_i32_0 : i32, i32, i32
  }
}

</mosaic_0001>

<llo_original>
// kernel: tpu_custom_call.1
$region0: #{tpu_custom_call.1}
  #allocation0 [shape = 'u32[]', space=smem, size = 0x4, offset = 0x4, fixed_abs, tag = 'smem constant byte address 0x4 - core index']
  #allocation1 [shape = 'u32[144,128]{1,0:T(1,128)}', space=vmem, size = 0x12000, scoped, tag = 'internal scratch']
  #allocation2 [shape = 'bf16[2,20,128]{2,1,0:T(8,128)(2,1)}', space=vmem, size = 0x3000, scoped, tag = 'scratch operand']
  %s0 = inlined_call_operand.hbm [shape: f32[2,16,128], index: 0, kind: input, shape index: {}]
  %s1 = inlined_call_operand.hbm [shape: bf16[384,128], index: 1, kind: input, shape index: {}]
  %s2 = inlined_call_operand.vmem [shape: f32[1,128], index: 2, kind: input, shape index: {}]
  %s3 = inlined_call_operand.vmem [shape: f32[1,128], index: 3, kind: input, shape index: {}]
  %s4 = inlined_call_operand.vmem [shape: f32[1,128], index: 4, kind: input, shape index: {}]
  %s5 = inlined_call_operand.hbm [shape: f32[2,16,128], index: 5, kind: output, shape index: {}]
  %s6 = sld [smem:[#allocation0]]
  $region38: #{tpu_custom_call.1} parent=0
    _
  %s8 = ssub.s32 1, %s6
  %s9 = scalar_select 0, %s8, %s6
  $region1: #{tpu_custom_call.1} parent=0
    #allocation3 [shape = 'u8[16384]{0}', space=vmem, size = 0x4000, scoped, tag = 'input window, operand 0, single buffered']
    #allocation4 [shape = 's32[1]{0}', space=sflag, size = 0x4, scoped, tag = 'scoped memory for tpu_custom_call.1']
    #allocation5 [shape = 's32[1]{0}', space=sflag, size = 0x4, scoped, tag = 'scoped memory for tpu_custom_call.1']
    #allocation6 [shape = 'u8[98304]{0}', space=vmem, size = 0x18000, scoped, tag = 'input window, operand 1, single buffered']
    #allocation7 [shape = 's32[1]{0}', space=sflag, size = 0x4, scoped, tag = 'scoped memory for tpu_custom_call.1']
    #allocation8 [shape = 'u8[16384]{0}', space=vmem, size = 0x4000, scoped, tag = 'output window, operand 0, single buffered']
    %10 = vsyncpa [#allocation4], 0
    %11 = vsyncpa [#allocation7], 0
    %12 = vsyncpa [#allocation5], 0
    // Predicated region
    $region2: #{tpu_custom_call.1} parent=1 // pred_check
      _
    $region3: #{tpu_custom_call.1} parent=1 // pred_check_branch
      %14 = sbr.rel (0) target = $region5
    $region4: #{tpu_custom_call.1} parent=1 // pred_region
      %s16 = ssub.s32 512, 512
      %17 = vsyncadd [#allocation4], %s16
      %s18 = sshll.u32 [#allocation3], 4
      %s19 = int_to_ptr.vmem [resolvable:$true] %s18
      %24 = dma.hbm_to_vmem [thread:$0]  %s0, 512, %s19, [#allocation4], 128, 128, 8
    $region5: #{tpu_custom_call.1} parent=1 // pred_fallthru
      _
    // Predicated region
    $region6: #{tpu_custom_call.1} parent=1 // pred_check
      _
    $region7: #{tpu_custom_call.1} parent=1 // pred_check_branch
      %26 = sbr.rel (0) target = $region9
    $region8: #{tpu_custom_call.1} parent=1 // pred_region
      %s28 = ssub.s32 3072, 3072
      %29 = vsyncadd [#allocation7], %s28
      %s30 = sshll.u32 [#allocation6], 4
      %s31 = int_to_ptr.vmem [resolvable:$true] %s30
      %36 = dma.hbm_to_vmem [thread:$0]  %s1, 3072, %s31, [#allocation7], 64, 64, 4
    $region9: #{tpu_custom_call.1} parent=1 // pred_fallthru
      _
    // Predicated region
    $region10: #{tpu_custom_call.1} parent=1 // pred_check
      _
    $region11: #{tpu_custom_call.1} parent=1 // pred_check_branch
      %38 = sbr.rel (0) target = $region13
    $region12: #{tpu_custom_call.1} parent=1 // pred_region
      _
    $region13: #{tpu_custom_call.1} parent=1 // pred_fallthru
      _
    // Predicated region
    $region14: #{tpu_custom_call.1} parent=1 // pred_check
      _
    $region15: #{tpu_custom_call.1} parent=1 // pred_check_branch
      %40 = sbr.rel (0) target = $region17
    $region16: #{tpu_custom_call.1} parent=1 // pred_region
      _
    $region17: #{tpu_custom_call.1} parent=1 // pred_fallthru
      _
    // Predicated region
    $region18: #{tpu_custom_call.1} parent=1 // pred_check
      _
    $region19: #{tpu_custom_call.1} parent=1 // pred_check_branch
      %42 = sbr.rel (0) target = $region21
    $region20: #{tpu_custom_call.1} parent=1 // pred_region
      _
    $region21: #{tpu_custom_call.1} parent=1 // pred_fallthru
      _
    // Predicated region
    $region22: #{tpu_custom_call.1} parent=1 // pred_check
      _
    $region23: #{tpu_custom_call.1} parent=1 // pred_check_branch
      %44 = sbr.rel (0) target = $region25
    $region24: #{tpu_custom_call.1} parent=1 // pred_region
      %45 = dma.done [#allocation4], 512
    $region25: #{tpu_custom_call.1} parent=1 // pred_fallthru
      _
    // Predicated region
    $region26: #{tpu_custom_call.1} parent=1 // pred_check
      _
    $region27: #{tpu_custom_call.1} parent=1 // pred_check_branch
      %47 = sbr.rel (0) target = $region29
    $region28: #{tpu_custom_call.1} parent=1 // pred_region
      %48 = dma.done [#allocation7], 3072
    $region29: #{tpu_custom_call.1} parent=1 // pred_fallthru
      _
    %v50 = vld [vmem:[#allocation3] sm:$0xff]
    %v51 = vld [vmem:[#allocation3 + $0x8] sm:$0xff]
    %v52 = vld [vmem:[#allocation3 + $0x10] sm:$0xff]
    %v53 = vld [vmem:[#allocation3 + $0x18] sm:$0xff]
    %v54 = vld [vmem:[%s2] sm:$0x1]
    %v56 = vlaneseq
    %v57 = vshrl.u32 %v56, 7
    %v58 = vsub.s32 0, %v57
    %v59 = vrot.slane %v54, %v58
    %v61 = vmul.f32 %v50, %v59
    %v62 = vmul.f32 %v51, %v59
    %v63 = vmul.f32 %v52, %v59
    %v64 = vmul.f32 %v53, %v59
    %v65 = vld [vmem:[%s3] sm:$0x1]
    %v67 = vlaneseq
    %v68 = vshrl.u32 %v67, 7
    %v69 = vsub.s32 0, %v68
    %v70 = vrot.slane %v65, %v69
    %v72 = vadd.f32 %v61, %v70
    %v73 = vadd.f32 %v62, %v70
    %v74 = vadd.f32 %v63, %v70
    %v75 = vadd.f32 %v64, %v70
    %vm76 = vcmp.gt.f32.partialorder %v72, 0.0
    %vm77 = vcmp.gt.f32.partialorder %v73, 0.0
    %vm78 = vcmp.gt.f32.partialorder %v74, 0.0
    %vm79 = vcmp.gt.f32.partialorder %v75, 0.0
    %vm80 = vcmp.lt.f32.partialorder %v72, 0.0
    %vm81 = vcmp.lt.f32.partialorder %v73, 0.0
    %vm82 = vcmp.lt.f32.partialorder %v74, 0.0
    %vm83 = vcmp.lt.f32.partialorder %v75, 0.0
    %v84 = vsel %vm80, -1.0, 0.0
    %v85 = vsel %vm81, -1.0, 0.0
    %v86 = vsel %vm82, -1.0, 0.0
    %v87 = vsel %vm83, -1.0, 0.0
    %v88 = vsel %vm76, 1.0, %v84
    %v89 = vsel %vm77, 1.0, %v85
    %v90 = vsel %vm78, 1.0, %v86
    %v91 = vsel %vm79, 1.0, %v87
    %v92 = vpack.c.bf16 %v89, %v88
    %v93 = vpack.c.bf16 %v91, %v90
    %94 = vst [vmem:[#allocation2] sm:$0x1] 0
    %95 = vst [vmem:[#allocation2 + $0xc] sm:$0x1] 0
    %96 = vst [vmem:[#allocation2 + $0x8] sm:$0x2] 0
    %97 = vst [vmem:[#allocation2 + $0x14] sm:$0x2] 0
    %v100 = vunpack.c.l.b16 %v92
    %v101 = vunpack.c.h.b16 %v92
    %v102 = vunpack.c.l.b16 %v93
    %v103 = vunpack.c.h.b16 %v93
    %v104 = vpack.c.b16 %v100, %v100
    %v105 = vpack.c.b16 %v101, %v101
    %v106 = vpack.c.b16 %v102, %v102
    %v107 = vpack.c.b16 %v103, %v103
    %vm108 = vcmask 1040384
    %vm109 = vcmask 1044484
    %vm110 = vmor %vm108, %vm109
    %v111 = vrot.slane %v104, 7
    %v112 = vrot.slane %v111, 4
    %v113 = vrot.slane %v105, 7
    %v114 = vsel %vm110, %v112, %v113
    %v115 = vrot.slane %v113, 4
    %v116 = vrot.slane %v106, 7
    %v117 = vrot.slane %v116, 4
    %v118 = vrot.slane %v107, 7
    %v119 = vsel %vm110, %v117, %v118
    %v120 = vrot.slane %v118, 4
    %127 = vst [vmem:[#allocation2] sm:$0xe] %v111
    %128 = vst [vmem:[#allocation2 + $0x4] sm:$0xf] %v114
    %129 = vst [vmem:[#allocation2 + $0x8] sm:$0x1] %v115
    %130 = vst [vmem:[#allocation2 + $0xc] sm:$0xe] %v116
    %131 = vst [vmem:[#allocation2 + $0x10] sm:$0xf] %v119
    %132 = vst [vmem:[#allocation2 + $0x14] sm:$0x1] %v120
    %v133 = vld [vmem:[#allocation2] sm:$0xf]
    %v134 = vld [vmem:[#allocation2 + $0x4] sm:$0xf]
    %v135 = vld [vmem:[#allocation2 + $0xc] sm:$0xf]
    %v136 = vld [vmem:[#allocation2 + $0x10] sm:$0xf]
    %v137 = vld [vmem:[#allocation2] sm:$0xe]
    %v138 = vld [vmem:[#allocation2 + $0x8] sm:$0x1]
    %v139 = vld [vmem:[#allocation2 + $0xc] sm:$0xe]
    %v140 = vld [vmem:[#allocation2 + $0x14] sm:$0x1]
    %v141 = vld [vmem:[#allocation2] sm:$0xc]
    %v142 = vld [vmem:[#allocation2 + $0x8] sm:$0x3]
    %v143 = vld [vmem:[#allocation2 + $0xc] sm:$0xc]
    %v144 = vld [vmem:[#allocation2 + $0x14] sm:$0x3]
    %v149 = vunpack.c.l.b16 %v133
    %v150 = vunpack.c.l.b16 %v134
    %v151 = vunpack.c.l.b16 %v135
    %v152 = vunpack.c.l.b16 %v136
    %v153 = vpack.c.b16 %v150, %v149
    %v154 = vpack.c.b16 %v152, %v151
    %v161 = vunpack.c.l.b16 %v137
    %v162 = vunpack.c.l.b16 %v138
    %v163 = vunpack.c.l.b16 %v139
    %v164 = vunpack.c.l.b16 %v140
    %v165 = vpack.c.b16 %v150, %v161
    %v166 = vpack.c.b16 %v162, %v162
    %v167 = vpack.c.b16 %v152, %v163
    %v168 = vpack.c.b16 %v164, %v164
    %vm169 = vcmask 1046528
    %v170 = vrot.slane %v165, 1
    %v171 = vrot.slane %v166, 1
    %v172 = vsel %vm169, %v170, %v171
    %v173 = vrot.slane %v167, 1
    %v174 = vrot.slane %v168, 1
    %v175 = vsel %vm169, %v173, %v174
    %v182 = vunpack.c.l.b16 %v141
    %v183 = vunpack.c.l.b16 %v142
    %v184 = vunpack.c.l.b16 %v143
    %v185 = vunpack.c.l.b16 %v144
    %v186 = vpack.c.b16 %v150, %v182
    %v187 = vpack.c.b16 %v183, %v183
    %v188 = vpack.c.b16 %v152, %v184
    %v189 = vpack.c.b16 %v185, %v185
    %vm190 = vcmask 1045504
    %v191 = vrot.slane %v186, 2
    %v192 = vrot.slane %v187, 2
    %v193 = vsel %vm190, %v191, %v192
    %v194 = vrot.slane %v188, 2
    %v195 = vrot.slane %v189, 2
    %v196 = vsel %vm190, %v194, %v195
    %v199 = vld [vmem:[#allocation6] sm:$0xf]
    %v200 = vld [vmem:[#allocation6 + $0x4] sm:$0xf]
    %v201 = vld [vmem:[#allocation6 + $0x8] sm:$0xf]
    %v202 = vld [vmem:[#allocation6 + $0xc] sm:$0xf]
    %v203 = vld [vmem:[#allocation6 + $0x10] sm:$0xf]
    %v204 = vld [vmem:[#allocation6 + $0x14] sm:$0xf]
    %v205 = vld [vmem:[#allocation6 + $0x18] sm:$0xf]
    %v206 = vld [vmem:[#allocation6 + $0x1c] sm:$0xf]
    %v207 = vld [vmem:[#allocation6 + $0x20] sm:$0xf]
    %v208 = vld [vmem:[#allocation6 + $0x24] sm:$0xf]
    %v209 = vld [vmem:[#allocation6 + $0x28] sm:$0xf]
    %v210 = vld [vmem:[#allocation6 + $0x2c] sm:$0xf]
    %v211 = vld [vmem:[#allocation6 + $0x30] sm:$0xf]
    %v212 = vld [vmem:[#allocation6 + $0x34] sm:$0xf]
    %v213 = vld [vmem:[#allocation6 + $0x38] sm:$0xf]
    %v214 = vld [vmem:[#allocation6 + $0x3c] sm:$0xf]
    %v215 = vld [vmem:[#allocation6 + $0x40] sm:$0xf]
    %v216 = vld [vmem:[#allocation6 + $0x44] sm:$0xf]
    %v217 = vld [vmem:[#allocation6 + $0x48] sm:$0xf]
    %v218 = vld [vmem:[#allocation6 + $0x4c] sm:$0xf]
    %v219 = vld [vmem:[#allocation6 + $0x50] sm:$0xf]
    %v220 = vld [vmem:[#allocation6 + $0x54] sm:$0xf]
    %v221 = vld [vmem:[#allocation6 + $0x58] sm:$0xf]
    %v222 = vld [vmem:[#allocation6 + $0x5c] sm:$0xf]
    %v223 = vld [vmem:[#allocation6 + $0x60] sm:$0xf]
    %v224 = vld [vmem:[#allocation6 + $0x64] sm:$0xf]
    %v225 = vld [vmem:[#allocation6 + $0x68] sm:$0xf]
    %v226 = vld [vmem:[#allocation6 + $0x6c] sm:$0xf]
    %v227 = vld [vmem:[#allocation6 + $0x70] sm:$0xf]
    %v228 = vld [vmem:[#allocation6 + $0x74] sm:$0xf]
    %v229 = vld [vmem:[#allocation6 + $0x78] sm:$0xf]
    %v230 = vld [vmem:[#allocation6 + $0x7c] sm:$0xf]
    %v231 = vld [vmem:[#allocation6 + $0x80] sm:$0xf]
    %v232 = vld [vmem:[#allocation6 + $0x84] sm:$0xf]
    %v233 = vld [vmem:[#allocation6 + $0x88] sm:$0xf]
    %v234 = vld [vmem:[#allocation6 + $0x8c] sm:$0xf]
    %v235 = vld [vmem:[#allocation6 + $0x90] sm:$0xf]
    %v236 = vld [vmem:[#allocation6 + $0x94] sm:$0xf]
    %v237 = vld [vmem:[#allocation6 + $0x98] sm:$0xf]
    %v238 = vld [vmem:[#allocation6 + $0x9c] sm:$0xf]
    %v239 = vld [vmem:[#allocation6 + $0xa0] sm:$0xf]
    %v240 = vld [vmem:[#allocation6 + $0xa4] sm:$0xf]
    %v241 = vld [vmem:[#allocation6 + $0xa8] sm:$0xf]
    %v242 = vld [vmem:[#allocation6 + $0xac] sm:$0xf]
    %v243 = vld [vmem:[#allocation6 + $0xb0] sm:$0xf]
    %v244 = vld [vmem:[#allocation6 + $0xb4] sm:$0xf]
    %v245 = vld [vmem:[#allocation6 + $0xb8] sm:$0xf]
    %v246 = vld [vmem:[#allocation6 + $0xbc] sm:$0xf]
    %v295 = vunpack.c.l.b16 %v199
    %v296 = vunpack.c.l.b16 %v200
    %v297 = vunpack.c.l.b16 %v201
    %v298 = vunpack.c.l.b16 %v202
    %v299 = vunpack.c.l.b16 %v203
    %v300 = vunpack.c.l.b16 %v204
    %v301 = vunpack.c.l.b16 %v205
    %v302 = vunpack.c.l.b16 %v206
    %v303 = vunpack.c.l.b16 %v207
    %v304 = vunpack.c.l.b16 %v208
    %v305 = vunpack.c.l.b16 %v209
    %v306 = vunpack.c.l.b16 %v210
    %v307 = vunpack.c.l.b16 %v211
    %v308 = vunpack.c.l.b16 %v212
    %v309 = vunpack.c.l.b16 %v213
    %v310 = vunpack.c.l.b16 %v214
    %v311 = vunpack.c.l.b16 %v215
    %v312 = vunpack.c.l.b16 %v216
    %v313 = vunpack.c.l.b16 %v217
    %v314 = vunpack.c.l.b16 %v218
    %v315 = vunpack.c.l.b16 %v219
    %v316 = vunpack.c.l.b16 %v220
    %v317 = vunpack.c.l.b16 %v221
    %v318 = vunpack.c.l.b16 %v222
    %v319 = vunpack.c.l.b16 %v223
    %v320 = vunpack.c.l.b16 %v224
    %v321 = vunpack.c.l.b16 %v225
    %v322 = vunpack.c.l.b16 %v226
    %v323 = vunpack.c.l.b16 %v227
    %v324 = vunpack.c.l.b16 %v228
    %v325 = vunpack.c.l.b16 %v229
    %v326 = vunpack.c.l.b16 %v230
    %v327 = vunpack.c.l.b16 %v231
    %v328 = vunpack.c.l.b16 %v232
    %v329 = vunpack.c.l.b16 %v233
    %v330 = vunpack.c.l.b16 %v234
    %v331 = vunpack.c.l.b16 %v235
    %v332 = vunpack.c.l.b16 %v236
    %v333 = vunpack.c.l.b16 %v237
    %v334 = vunpack.c.l.b16 %v238
    %v335 = vunpack.c.l.b16 %v239
    %v336 = vunpack.c.l.b16 %v240
    %v337 = vunpack.c.l.b16 %v241
    %v338 = vunpack.c.l.b16 %v242
    %v339 = vunpack.c.l.b16 %v243
    %v340 = vunpack.c.l.b16 %v244
    %v341 = vunpack.c.l.b16 %v245
    %v342 = vunpack.c.l.b16 %v246
    %v343 = vpack.c.b16 %v296, %v295
    %v344 = vpack.c.b16 %v298, %v297
    %v345 = vpack.c.b16 %v300, %v299
    %v346 = vpack.c.b16 %v302, %v301
    %v347 = vpack.c.b16 %v304, %v303
    %v348 = vpack.c.b16 %v306, %v305
    %v349 = vpack.c.b16 %v308, %v307
    %v350 = vpack.c.b16 %v310, %v309
    %v351 = vpack.c.b16 %v312, %v311
    %v352 = vpack.c.b16 %v314, %v313
    %v353 = vpack.c.b16 %v316, %v315
    %v354 = vpack.c.b16 %v318, %v317
    %v355 = vpack.c.b16 %v320, %v319
    %v356 = vpack.c.b16 %v322, %v321
    %v357 = vpack.c.b16 %v324, %v323
    %v358 = vpack.c.b16 %v326, %v325
    %v359 = vpack.c.b16 %v328, %v327
    %v360 = vpack.c.b16 %v330, %v329
    %v361 = vpack.c.b16 %v332, %v331
    %v362 = vpack.c.b16 %v334, %v333
    %v363 = vpack.c.b16 %v336, %v335
    %v364 = vpack.c.b16 %v338, %v337
    %v365 = vpack.c.b16 %v340, %v339
    %v366 = vpack.c.b16 %v342, %v341
    %391 = vmatprep.subr.bf16.mxu0 0
    %392 = vmatpush1.bf16.msra.mxu0 %v343
    %393 = vmatprep.subr.bf16.mxu0 0
    %394 = vmatpush1.bf16.msra.mxu0 %v344
    %395 = vmatprep.subr.bf16.mxu0 0
    %396 = vmatpush1.bf16.msra.mxu0 %v345
    %397 = vmatprep.subr.bf16.mxu0 0
    %398 = vmatpush1.bf16.msra.mxu0 %v346
    %399 = vmatprep.subr.bf16.mxu0 0
    %400 = vmatpush1.bf16.msra.mxu0 %v347
    %401 = vmatprep.subr.bf16.mxu0 0
    %402 = vmatpush1.bf16.msra.mxu0 %v348
    %403 = vmatprep.subr.bf16.mxu0 0
    %404 = vmatpush1.bf16.msra.mxu0 %v349
    %405 = vmatprep.subr.bf16.mxu0 0
    %406 = vmatpush1.bf16.msra.mxu0 %v350
    %407 = vmatprep.subr.bf16.mxu0 0
    %408 = vmatpush1.bf16.msra.mxu0 %v351
    %409 = vmatprep.subr.bf16.mxu0 0
    %410 = vmatpush1.bf16.msra.mxu0 %v352
    %411 = vmatprep.subr.bf16.mxu0 0
    %412 = vmatpush1.bf16.msra.mxu0 %v353
    %413 = vmatprep.subr.bf16.mxu0 0
    %414 = vmatpush1.bf16.msra.mxu0 %v354
    %415 = vmatprep.subr.bf16.mxu0 0
    %416 = vmatpush1.bf16.msra.mxu0 %v355
    %417 = vmatprep.subr.bf16.mxu0 0
    %418 = vmatpush1.bf16.msra.mxu0 %v356
    %419 = vmatprep.subr.bf16.mxu0 0
    %420 = vmatpush1.bf16.msra.mxu0 %v357
    %421 = vmatprep.subr.bf16.mxu0 0
    %422 = vmatpush1.bf16.msra.mxu0 %v358
    %423 = vmatprep.mubr.bf16.mxu0 %v172
    %424 = vmatmul.mubr.bf16.gmra.mrb[0].mxu0 %v153
    %v425 = vpop.f32.mrb[0].mxu0
    %v426 = vadd.f32 0.0, %v425
    %v427 = vpop.f32.mrb[0].mxu0
    %v428 = vpop.f32.mrb[0].mxu0
    %v429 = vadd.f32 0.0, %v428
    %v430 = vpop.f32.mrb[0].mxu0
    %431 = vmatprep.mubr.bf16.mxu0 %v175
    %432 = vmatmul.mubr.bf16.gmra.mrb[0].mxu0 %v154
    %v433 = vpop.f32.mrb[0].mxu0
    %v434 = vadd.f32 0.0, %v433
    %v435 = vpop.f32.mrb[0].mxu0
    %v436 = vpop.f32.mrb[0].mxu0
    %v437 = vadd.f32 0.0, %v436
    %v438 = vpop.f32.mrb[0].mxu0
    %439 = vdwg.mxu0
    %440 = vmatprep.subr.bf16.mxu0 0
    %441 = vmatpush1.bf16.msra.mxu0 %v359
    %442 = vmatprep.subr.bf16.mxu0 0
    %443 = vmatpush1.bf16.msra.mxu0 %v360
    %444 = vmatprep.subr.bf16.mxu0 0
    %445 = vmatpush1.bf16.msra.mxu0 %v361
    %446 = vmatprep.subr.bf16.mxu0 0
    %447 = vmatpush1.bf16.msra.mxu0 %v362
    %448 = vmatprep.subr.bf16.mxu0 0
    %449 = vmatpush1.bf16.msra.mxu0 %v363
    %450 = vmatprep.subr.bf16.mxu0 0
    %451 = vmatpush1.bf16.msra.mxu0 %v364
    %452 = vmatprep.subr.bf16.mxu0 0
    %453 = vmatpush1.bf16.msra.mxu0 %v365
    %454 = vmatprep.subr.bf16.mxu0 0
    %455 = vmatpush1.bf16.msra.mxu0 %v366
    %456 = vmatprep.subr.bf16.mxu0 0
    %457 = vmatpush1.bf16.msra.mxu0 0
    %458 = vmatprep.subr.bf16.mxu0 0
    %459 = vmatpush1.bf16.msra.mxu0 0
    %460 = vmatprep.subr.bf16.mxu0 0
    %461 = vmatpush1.bf16.msra.mxu0 0
    %462 = vmatprep.subr.bf16.mxu0 0
    %463 = vmatpush1.bf16.msra.mxu0 0
    %464 = vmatprep.subr.bf16.mxu0 0
    %465 = vmatpush1.bf16.msra.mxu0 0
    %466 = vmatprep.subr.bf16.mxu0 0
    %467 = vmatpush1.bf16.msra.mxu0 0
    %468 = vmatprep.subr.bf16.mxu0 0
    %469 = vmatpush1.bf16.msra.mxu0 0
    %470 = vmatprep.subr.bf16.mxu0 0
    %471 = vmatpush1.bf16.msra.mxu0 0
    %472 = vmatprep.mubr.bf16.mxu0 0
    %473 = vmatmul.mubr.bf16.gmra.mrb[0].mxu0 %v193
    %v474 = vpop.f32.mrb[0].mxu0
    %v475 = vadd.f32 %v426, %v474
    %v476 = vpop.f32.mrb[0].mxu0
    %v477 = vpop.f32.mrb[0].mxu0
    %v478 = vadd.f32 %v429, %v477
    %v479 = vpop.f32.mrb[0].mxu0
    %480 = vmatprep.mubr.bf16.mxu0 0
    %481 = vmatmul.mubr.bf16.gmra.mrb[0].mxu0 %v196
    %v482 = vpop.f32.mrb[0].mxu0
    %v483 = vadd.f32 %v434, %v482
    %v484 = vpop.f32.mrb[0].mxu0
    %v485 = vpop.f32.mrb[0].mxu0
    %v486 = vadd.f32 %v437, %v485
    %v487 = vpop.f32.mrb[0].mxu0
    %488 = vdwg.mxu0
    %v489 = vld [vmem:[%s4] sm:$0x1]
    %v491 = vlaneseq
    %v492 = vshrl.u32 %v491, 7
    %v493 = vsub.s32 0, %v492
    %v494 = vrot.slane %v489, %v493
    %v496 = vadd.f32 %v475, %v494
    %v497 = vadd.f32 %v478, %v494
    %v498 = vadd.f32 %v483, %v494
    %v499 = vadd.f32 %v486, %v494
    %v500 = vmax.f32 %v496, 0.0
    %v501 = vmax.f32 %v497, 0.0
    %v502 = vmax.f32 %v498, 0.0
    %v503 = vmax.f32 %v499, 0.0
    %v504 = vadd.f32 %v500, %v50
    %v505 = vadd.f32 %v501, %v51
    %v506 = vadd.f32 %v502, %v52
    %v507 = vadd.f32 %v503, %v53
    %508 = vst [vmem:[#allocation8] sm:$0xff] %v504
    %509 = vst [vmem:[#allocation8 + $0x8] sm:$0xff] %v505
    %510 = vst [vmem:[#allocation8 + $0x10] sm:$0xff] %v506
    %511 = vst [vmem:[#allocation8 + $0x18] sm:$0xff] %v507
    // Predicated region
    $region30: #{tpu_custom_call.1} parent=1 // pred_check
      _
    $region31: #{tpu_custom_call.1} parent=1 // pred_check_branch
      %513 = sbr.rel (0) target = $region33
    $region32: #{tpu_custom_call.1} parent=1 // pred_region
      %s515 = ssub.s32 512, 512
      %516 = vsyncadd [#allocation5], %s515
      %s517 = sshll.u32 [#allocation8], 4
      %s518 = int_to_ptr.vmem [resolvable:$true] %s517
      %523 = dma.vmem_to_hbm [thread:$0]  %s518, 512, %s5, [#allocation5], 128, 128, 8
    $region33: #{tpu_custom_call.1} parent=1 // pred_fallthru
      _
    // Predicated region
    $region34: #{tpu_custom_call.1} parent=1 // pred_check
      _
    $region35: #{tpu_custom_call.1} parent=1 // pred_check_branch
      %525 = sbr.rel (0) target = $region37
    $region36: #{tpu_custom_call.1} parent=1 // pred_region
      %526 = dma.done [#allocation5], 512
    $region37: #{tpu_custom_call.1} parent=1 // pred_fallthru
      _
    %527 = vsyncpa [#allocation4], 1
    %528 = vsyncpa [#allocation7], 1
    %529 = vsyncpa [#allocation5], 1

</llo_original>
